<compile_context>
chip_gen: v7x
topology: tpu7x:2x2x1
jax: 0.10.0
libtpu: 0.0.40
codegen_flags: <defaults>
</compile_context>

<pallas_src>
import functools

import numpy as np
import jax
import jax.numpy as jnp
from jax.experimental import pallas as pl
from jax.experimental.pallas import tpu as pltpu

DIM = 128  # lane-dense working width for every layer


# ---------------------------------------------------------------------------
# Fused forward kernel: 5 MXU matmuls + fused activations, everything in VMEM
# ---------------------------------------------------------------------------
def _tk_fused_kernel(x_ref, w_ref, b_ref, o_ref):
    f32 = jnp.float32
    bf16 = jnp.bfloat16
    slope = jnp.float32(0.1)

    def mm(y, k):
        # bf16 x bf16 -> f32 accumulate: a single MXU pass per layer.
        return jnp.dot(y.astype(bf16), w_ref[k], preferred_element_type=f32)

    # Conv1d(4, 8, 3, 1) (pre-folded) + bias + LeakyReLU(0.1)
    y = mm(x_ref[...], 0) + b_ref[0:1, :]
    y = jnp.where(y >= 0, y, slope * y)

    # Conv1d(8, 16, 3, 2) (pre-folded) + bias + PReLU(16, 0.25)  (alpha/channel)
    y = mm(y, 1) + b_ref[1:2, :]
    y = jnp.where(y >= 0, y, b_ref[2:3, :] * y)

    # ConvTranspose1d(16, 8, 4, 2) (pre-folded) + bias + LeakyReLU(0.1)
    y = mm(y, 2) + b_ref[3:4, :]
    y = jnp.where(y >= 0, y, slope * y)

    # Flatten: implied by the channel-major (c*Lout + t) column layout.

    # Linear(112, 32) + Sigmoid (stable tanh form)
    y = mm(y, 3) + b_ref[4:5, :]
    y = 0.5 * (jnp.tanh(0.5 * y) + 1.0)

    # TODO(synk): Dropout(p=0.5) applied as eval-mode identity; training-mode random masking not implemented.

    # Linear(32, 10) + Softmax(dim=1).  Padded logit lanes carry a -1e30 bias,
    # so exp() drives them to exactly 0 and the denominator is unaffected.
    y = mm(y, 4) + b_ref[5:6, :]
    m = jnp.max(y, axis=-1, keepdims=True)
    e = jnp.exp(y - m)
    o_ref[...] = (e / jnp.sum(e, axis=-1, keepdims=True)).astype(o_ref.dtype)


# ---------------------------------------------------------------------------
# Host-side operator folding (exact, pure indexing -- no matmul rounding)
# ---------------------------------------------------------------------------
def _conv_fold_matrix(w, lin, stride):
    """Conv1d (torch layout w: (Cout, Cin, K), padding=0) as one matmul.

    M[c*Lin + j, o*Lout + t] = w[o, c, j - t*stride]   (0 if tap out of range),
    so that y_flat = x_flat @ M reproduces Conv1d on the flattened (C, L) layout.
    """
    w = np.asarray(w)
    cout, cin, k = w.shape
    lout = (lin - k) // stride + 1
    j = np.arange(lin)[:, None]                          # (Lin, 1)
    t = np.arange(lout)[None, :]                         # (1, Lout)
    tap = j - t * stride                                 # (Lin, Lout)
    valid = (tap >= 0) & (tap < k)
    tap_c = np.clip(tap, 0, k - 1)
    wg = w[:, :, tap_c] * valid.astype(w.dtype)          # (Cout, Cin, Lin, Lout)
    m = np.transpose(wg, (1, 2, 0, 3)).reshape(cin * lin, cout * lout)
    return m, lout


def _deconv_fold_matrix(w, lin, stride):
    """ConvTranspose1d (torch layout w: (Cin, Cout, K), padding=0) as one matmul.

    M[c*Lin + t, o*Lout + j] = w[c, o, j - t*stride]   (0 if tap out of range).
    """
    w = np.asarray(w)
    cin, cout, k = w.shape
    lout = (lin - 1) * stride + k
    t = np.arange(lin)[:, None]                          # (Lin, 1)
    j = np.arange(lout)[None, :]                         # (1, Lout)
    tap = j - t * stride                                 # (Lin, Lout)
    valid = (tap >= 0) & (tap < k)
    tap_c = np.clip(tap, 0, k - 1)
    wg = w[:, :, tap_c] * valid.astype(w.dtype)          # (Cin, Cout, Lin, Lout)
    m = np.transpose(wg, (0, 2, 1, 3)).reshape(cin * lin, cout * lout)
    return m, lout


def _channel_row(v, lout):
    """Per-channel vector -> flat (C*Lout,) row matching the flattened layout."""
    v = np.asarray(v)
    return np.broadcast_to(v[:, None], (v.shape[0], lout)).reshape(-1)


def prepare_operands(p, lin0):
    """Build the coalesced fused-kernel operands (done once, outside jit).

    Returns:
      w_slab: (5, 128, 128) bf16 — each pre-folded layer matrix embedded
              top-left and zero-padded to a full 128x128 MXU tile.
      bias:   (8, 128) f32   — rows: b1, b2, prelu_alpha, b3, b4, b5.
              Row 5 (fc2 bias) has -1e30 in the padded lanes 10..127 so the
              softmax ignores them.
      n_out:  number of real output columns (10).
    """
    m1, l1 = _conv_fold_matrix(p["conv1_w"], lin0, stride=1)   # (64, 112)
    m2, l2 = _conv_fold_matrix(p["conv2_w"], l1, stride=2)     # (112, 96)
    m3, l3 = _deconv_fold_matrix(p["deconv_w"], l2, stride=2)  # (96, 112)
    w4 = np.asarray(p["fc1_w"]).T                              # (112, 32)
    w5 = np.asarray(p["fc2_w"]).T                              # (32, 10)
    n_out = w5.shape[1]

    mats = [m1, m2, m3, w4, w5]
    slab = np.zeros((len(mats), DIM, DIM), np.float32)
    for i, m in enumerate(mats):
        slab[i, : m.shape[0], : m.shape[1]] = m

    bias = np.zeros((8, DIM), np.float32)
    bias[0, : 8 * l1] = _channel_row(p["conv1_b"], l1)
    bias[1, : 16 * l2] = _channel_row(p["conv2_b"], l2)
    bias[2, : 16 * l2] = _channel_row(p["prelu_a"], l2)
    bias[3, : 8 * l3] = _channel_row(p["deconv_b"], l3)
    bias[4, : w4.shape[1]] = np.asarray(p["fc1_b"])
    bias[5, :n_out] = np.asarray(p["fc2_b"])
    bias[5, n_out:] = -1e30   # drive padded softmax logits to exp() == 0

    return jnp.asarray(slab, jnp.bfloat16), jnp.asarray(bias, jnp.float32), n_out


# ---------------------------------------------------------------------------
# TkModel.forward — one fused, gridless pallas_call, everything in VMEM
# ---------------------------------------------------------------------------
@functools.partial(jax.jit, static_argnames=("n_out",))
def tk_model_forward(w_slab, bias, x, n_out=10):
    bsz = x.shape[0]
    bpad = ((bsz + 7) // 8) * 8                      # sublane-dense batch
    x_flat = x.reshape(bsz, -1).astype(jnp.float32)  # (B, Cin*Lin) = layout of m1 rows
    k_in = x_flat.shape[1]
    xp = jnp.zeros((bpad, DIM), jnp.float32).at[:bsz, :k_in].set(x_flat)

    vmem = pl.BlockSpec(memory_space=pltpu.MemorySpace.VMEM)
    n_layers = w_slab.shape[0]
    cost = pl.CostEstimate(
        flops=2 * bpad * n_layers * DIM * DIM,
        transcendentals=2 * bpad * DIM,              # tanh + exp rows
        bytes_accessed=(xp.size * 4 + w_slab.size * 2 + bias.size * 4
                        + bpad * DIM * 4),
    )
    out = pl.pallas_call(
        _tk_fused_kernel,
        out_shape=jax.ShapeDtypeStruct((bpad, DIM), jnp.float32),
        in_specs=[vmem, vmem, vmem],
        out_specs=vmem,
        cost_estimate=cost,
    )(xp, w_slab, bias)
    return out[:bsz, :n_out]


# ---------------------------------------------------------------------------
# Parameters (deterministic init mirroring TkModel.initWeights)
# ---------------------------------------------------------------------------
def init_params(key):
    ks = jax.random.split(key, 5)

    def kaiming(k_, shape, fan_out):  # kaiming_normal_(mode='fan_out', nonlinearity='relu')
        return jax.random.normal(k_, shape, jnp.float32) * np.sqrt(2.0 / fan_out)

    p = {}
    p["conv1_w"] = kaiming(ks[0], (8, 4, 3), 8 * 3)           # Conv1d(4, 8, 3, 1)
    p["conv1_b"] = jnp.zeros((8,), jnp.float32)
    p["conv2_w"] = kaiming(ks[1], (16, 8, 3), 16 * 3)         # Conv1d(8, 16, 3, 2)
    p["conv2_b"] = jnp.zeros((16,), jnp.float32)
    p["prelu_a"] = jnp.full((16,), 0.25, jnp.float32)         # PReLU(16, 0.25)
    p["deconv_w"] = kaiming(ks[2], (16, 8, 4), 16 * 4)        # ConvTranspose1d(16, 8, 4, 2)
    p["deconv_b"] = jnp.zeros((8,), jnp.float32)
    p["fc1_w"] = jax.random.normal(ks[3], (32, 112), jnp.float32) * 0.001   # Linear(112, 32)
    p["fc1_b"] = jnp.zeros((32,), jnp.float32)
    p["fc2_w"] = jax.random.normal(ks[4], (10, 32), jnp.float32) * 0.001    # Linear(32, 10)
    p["fc2_b"] = jnp.zeros((10,), jnp.float32)
    return p


# ---------------------------------------------------------------------------
# Pure-numpy reference (PyTorch semantics) for correctness check
# ---------------------------------------------------------------------------
def _ref_forward(p, x):
    f64 = lambda a: np.asarray(a, np.float64)

    def conv(x_, w, b, s):
        B, C, L = x_.shape
        O, _, K = w.shape
        Lo = (L - K) // s + 1
        out = np.zeros((B, O, Lo))
        for t in range(Lo):
            out[:, :, t] = np.einsum("bck,ock->bo", x_[:, :, t * s:t * s + K], w)
        return out + b[None, :, None]

    def deconv(x_, w, b, s):
        B, C, L = x_.shape
        _, O, K = w.shape
        Lo = (L - 1) * s + K
        out = np.zeros((B, O, Lo))
        for t in range(L):
            out[:, :, t * s:t * s + K] += np.einsum("bc,cok->bok", x_[:, :, t], w)
        return out + b[None, :, None]

    lrelu = lambda v, a: np.where(v >= 0, v, a * v)

    y = lrelu(conv(f64(x), f64(p["conv1_w"]), f64(p["conv1_b"]), 1), 0.1)
    y = conv(y, f64(p["conv2_w"]), f64(p["conv2_b"]), 2)
    alpha = f64(p["prelu_a"])[None, :, None]
    y = np.where(y >= 0, y, alpha * y)
    y = lrelu(deconv(y, f64(p["deconv_w"]), f64(p["deconv_b"]), 2), 0.1)
    y = y.reshape(y.shape[0], -1)
    y = y @ f64(p["fc1_w"]).T + f64(p["fc1_b"])
    y = 1.0 / (1.0 + np.exp(-y))
    y = y @ f64(p["fc2_w"]).T + f64(p["fc2_b"])
    e = np.exp(y - y.max(axis=1, keepdims=True))
    return e / e.sum(axis=1, keepdims=True)


if __name__ == "__main__":
    key = jax.random.PRNGKey(0)
    pkey, xkey = jax.random.split(key)
    params = init_params(pkey)
    x = jax.random.normal(xkey, (2, 4, 16), jnp.float32)      # (batch, channels, length)

    w_slab, bias, n_out = prepare_operands(params, lin0=x.shape[-1])  # built once, outside jit
    out = jax.block_until_ready(tk_model_forward(w_slab, bias, x, n_out=n_out))
    assert out.shape == (2, 10), out.shape

    ref = _ref_forward(params, x)
    # Tolerance covers bf16 weight/activation quantization at the MXU inputs
    # (f32 accumulation); softmax normalization itself is exact.
    np.testing.assert_allclose(np.asarray(out), ref, atol=2e-3, rtol=2e-3)

    print("KERNEL_OK")
</pallas_src>

<mosaic_0001>
module attributes {stable_mosaic.version = 11 : i64} {
  func.func @_tk_fused_kernel(%arg0: memref<8x128xf32, #tpu.memory_space<vmem>>, %arg1: memref<5x128x128xbf16, #tpu.memory_space<vmem>>, %arg2: memref<8x128xf32, #tpu.memory_space<vmem>>, %arg3: memref<8x128xf32, #tpu.memory_space<vmem>>) attributes {dimension_semantics = [], scalar_prefetch = 0 : i64, scratch_operands = 0 : i64, tpu.core_type = #tpu.core_type<tc>} {
    %c0 = arith.constant 0 : index
    %c0_0 = arith.constant 0 : index
    %0 = vector.load %arg0[%c0, %c0_0] : memref<8x128xf32, #tpu.memory_space<vmem>>, vector<8x128xf32>
    %1 = arith.truncf %0 : vector<8x128xf32> to vector<8x128xbf16>
    %c0_1 = arith.constant 0 : index
    %c0_2 = arith.constant 0 : index
    %c0_3 = arith.constant 0 : index
    %2 = vector.load %arg1[%c0_1, %c0_2, %c0_3] : memref<5x128x128xbf16, #tpu.memory_space<vmem>>, vector<1x128x128xbf16>
    %3 = vector.shape_cast %2 : vector<1x128x128xbf16> to vector<128x128xbf16>
    %cst = arith.constant dense<0.000000e+00> : vector<8x128xf32>
    %4 = tpu.matmul %1, %3, %cst {dimension_numbers = #tpu.dot_dimension_numbers<[1], [0], [0], [1], [0, 0, 1, 1], [], []>} : vector<8x128xbf16>, vector<128x128xbf16>, vector<8x128xf32> -> vector<8x128xf32>
    %c0_4 = arith.constant 0 : index
    %c0_5 = arith.constant 0 : index
    %5 = vector.load %arg2[%c0_4, %c0_5] : memref<8x128xf32, #tpu.memory_space<vmem>>, vector<1x128xf32>
    %6 = vector.broadcast %5 : vector<1x128xf32> to vector<8x128xf32>
    %7 = arith.addf %4, %6 : vector<8x128xf32>
    %cst_6 = arith.constant 0.000000e+00 : f32
    %8 = vector.broadcast %cst_6 : f32 to vector<8x128xf32>
    %9 = arith.cmpf oge, %7, %8 : vector<8x128xf32>
    %cst_7 = arith.constant 1.000000e-01 : f32
    %10 = vector.broadcast %cst_7 : f32 to vector<8x128xf32>
    %11 = arith.mulf %10, %7 : vector<8x128xf32>
    %12 = arith.select %9, %7, %11 : vector<8x128xi1>, vector<8x128xf32>
    %13 = arith.truncf %12 : vector<8x128xf32> to vector<8x128xbf16>
    %c1 = arith.constant 1 : index
    %c0_8 = arith.constant 0 : index
    %c0_9 = arith.constant 0 : index
    %14 = vector.load %arg1[%c1, %c0_8, %c0_9] : memref<5x128x128xbf16, #tpu.memory_space<vmem>>, vector<1x128x128xbf16>
    %15 = vector.shape_cast %14 : vector<1x128x128xbf16> to vector<128x128xbf16>
    %cst_10 = arith.constant dense<0.000000e+00> : vector<8x128xf32>
    %16 = tpu.matmul %13, %15, %cst_10 {dimension_numbers = #tpu.dot_dimension_numbers<[1], [0], [0], [1], [0, 0, 1, 1], [], []>} : vector<8x128xbf16>, vector<128x128xbf16>, vector<8x128xf32> -> vector<8x128xf32>
    %c1_11 = arith.constant 1 : index
    %c0_12 = arith.constant 0 : index
    %17 = vector.load %arg2[%c1_11, %c0_12] : memref<8x128xf32, #tpu.memory_space<vmem>>, vector<1x128xf32>
    %18 = vector.broadcast %17 : vector<1x128xf32> to vector<8x128xf32>
    %19 = arith.addf %16, %18 : vector<8x128xf32>
    %cst_13 = arith.constant 0.000000e+00 : f32
    %20 = vector.broadcast %cst_13 : f32 to vector<8x128xf32>
    %21 = arith.cmpf oge, %19, %20 : vector<8x128xf32>
    %c2 = arith.constant 2 : index
    %c0_14 = arith.constant 0 : index
    %22 = vector.load %arg2[%c2, %c0_14] : memref<8x128xf32, #tpu.memory_space<vmem>>, vector<1x128xf32>
    %23 = vector.broadcast %22 : vector<1x128xf32> to vector<8x128xf32>
    %24 = arith.mulf %23, %19 : vector<8x128xf32>
    %25 = arith.select %21, %19, %24 : vector<8x128xi1>, vector<8x128xf32>
    %26 = arith.truncf %25 : vector<8x128xf32> to vector<8x128xbf16>
    %c2_15 = arith.constant 2 : index
    %c0_16 = arith.constant 0 : index
    %c0_17 = arith.constant 0 : index
    %27 = vector.load %arg1[%c2_15, %c0_16, %c0_17] : memref<5x128x128xbf16, #tpu.memory_space<vmem>>, vector<1x128x128xbf16>
    %28 = vector.shape_cast %27 : vector<1x128x128xbf16> to vector<128x128xbf16>
    %cst_18 = arith.constant dense<0.000000e+00> : vector<8x128xf32>
    %29 = tpu.matmul %26, %28, %cst_18 {dimension_numbers = #tpu.dot_dimension_numbers<[1], [0], [0], [1], [0, 0, 1, 1], [], []>} : vector<8x128xbf16>, vector<128x128xbf16>, vector<8x128xf32> -> vector<8x128xf32>
    %c3 = arith.constant 3 : index
    %c0_19 = arith.constant 0 : index
    %30 = vector.load %arg2[%c3, %c0_19] : memref<8x128xf32, #tpu.memory_space<vmem>>, vector<1x128xf32>
    %31 = vector.broadcast %30 : vector<1x128xf32> to vector<8x128xf32>
    %32 = arith.addf %29, %31 : vector<8x128xf32>
    %cst_20 = arith.constant 0.000000e+00 : f32
    %33 = vector.broadcast %cst_20 : f32 to vector<8x128xf32>
    %34 = arith.cmpf oge, %32, %33 : vector<8x128xf32>
    %cst_21 = arith.constant 1.000000e-01 : f32
    %35 = vector.broadcast %cst_21 : f32 to vector<8x128xf32>
    %36 = arith.mulf %35, %32 : vector<8x128xf32>
    %37 = arith.select %34, %32, %36 : vector<8x128xi1>, vector<8x128xf32>
    %38 = arith.truncf %37 : vector<8x128xf32> to vector<8x128xbf16>
    %c3_22 = arith.constant 3 : index
    %c0_23 = arith.constant 0 : index
    %c0_24 = arith.constant 0 : index
    %39 = vector.load %arg1[%c3_22, %c0_23, %c0_24] : memref<5x128x128xbf16, #tpu.memory_space<vmem>>, vector<1x128x128xbf16>
    %40 = vector.shape_cast %39 : vector<1x128x128xbf16> to vector<128x128xbf16>
    %cst_25 = arith.constant dense<0.000000e+00> : vector<8x128xf32>
    %41 = tpu.matmul %38, %40, %cst_25 {dimension_numbers = #tpu.dot_dimension_numbers<[1], [0], [0], [1], [0, 0, 1, 1], [], []>} : vector<8x128xbf16>, vector<128x128xbf16>, vector<8x128xf32> -> vector<8x128xf32>
    %c4 = arith.constant 4 : index
    %c0_26 = arith.constant 0 : index
    %42 = vector.load %arg2[%c4, %c0_26] : memref<8x128xf32, #tpu.memory_space<vmem>>, vector<1x128xf32>
    %43 = vector.broadcast %42 : vector<1x128xf32> to vector<8x128xf32>
    %44 = arith.addf %41, %43 : vector<8x128xf32>
    %cst_27 = arith.constant 5.000000e-01 : f32
    %45 = vector.broadcast %cst_27 : f32 to vector<8x128xf32>
    %46 = arith.mulf %45, %44 : vector<8x128xf32>
    %47 = math.tanh %46 : vector<8x128xf32>
    %cst_28 = arith.constant 1.000000e+00 : f32
    %48 = vector.broadcast %cst_28 : f32 to vector<8x128xf32>
    %49 = arith.addf %47, %48 : vector<8x128xf32>
    %cst_29 = arith.constant 5.000000e-01 : f32
    %50 = vector.broadcast %cst_29 : f32 to vector<8x128xf32>
    %51 = arith.mulf %50, %49 : vector<8x128xf32>
    %52 = arith.truncf %51 : vector<8x128xf32> to vector<8x128xbf16>
    %c4_30 = arith.constant 4 : index
    %c0_31 = arith.constant 0 : index
    %c0_32 = arith.constant 0 : index
    %53 = vector.load %arg1[%c4_30, %c0_31, %c0_32] : memref<5x128x128xbf16, #tpu.memory_space<vmem>>, vector<1x128x128xbf16>
    %54 = vector.shape_cast %53 : vector<1x128x128xbf16> to vector<128x128xbf16>
    %cst_33 = arith.constant dense<0.000000e+00> : vector<8x128xf32>
    %55 = tpu.matmul %52, %54, %cst_33 {dimension_numbers = #tpu.dot_dimension_numbers<[1], [0], [0], [1], [0, 0, 1, 1], [], []>} : vector<8x128xbf16>, vector<128x128xbf16>, vector<8x128xf32> -> vector<8x128xf32>
    %c5 = arith.constant 5 : index
    %c0_34 = arith.constant 0 : index
    %56 = vector.load %arg2[%c5, %c0_34] : memref<8x128xf32, #tpu.memory_space<vmem>>, vector<1x128xf32>
    %57 = vector.broadcast %56 : vector<1x128xf32> to vector<8x128xf32>
    %58 = arith.addf %55, %57 : vector<8x128xf32>
    %cst_35 = arith.constant dense<0xFF800000> : vector<8xf32>
    %59 = vector.multi_reduction <maximumf>, %58, %cst_35 [1] : vector<8x128xf32> to vector<8xf32>
    %60 = vector.shape_cast %59 : vector<8xf32> to vector<8x1xf32>
    %61 = vector.broadcast %60 : vector<8x1xf32> to vector<8x128xf32>
    %62 = arith.subf %58, %61 : vector<8x128xf32>
    %63 = math.exp %62 : vector<8x128xf32>
    %cst_36 = arith.constant dense<0.000000e+00> : vector<8xf32>
    %64 = vector.multi_reduction <add>, %63, %cst_36 [1] : vector<8x128xf32> to vector<8xf32>
    %65 = vector.shape_cast %64 : vector<8xf32> to vector<8x1xf32>
    %66 = vector.broadcast %65 : vector<8x1xf32> to vector<8x128xf32>
    %67 = arith.divf %63, %66 : vector<8x128xf32>
    %c0_37 = arith.constant 0 : index
    %c0_38 = arith.constant 0 : index
    %68 = vector.load %arg3[%c0_37, %c0_38] : memref<8x128xf32, #tpu.memory_space<vmem>>, vector<8x128xf32>
    tpu.vector_store %arg3[%c0_37, %c0_38], %67 {strides = array<i32>} : memref<8x128xf32, #tpu.memory_space<vmem>>, vector<8x128xf32>,
    return
  }
}

</mosaic_0001>

<llo_original>
// kernel: tk_model_forward.1
$region0: #{tk_model_forward.1}
  #allocation0 [shape = 'u32[]', space=smem, size = 0x4, offset = 0x4, fixed_abs, tag = 'smem constant byte address 0x4 - core index']
  #allocation1 [shape = 'u32[144,128]{1,0:T(1,128)}', space=vmem, size = 0x12000, scoped, tag = 'internal scratch']
  %s0 = inlined_call_operand.vmem [shape: f32[8,128], index: 0, kind: input, shape index: {}]
  %s1 = inlined_call_operand.hbm [shape: bf16[5,128,128], index: 1, kind: input, shape index: {}]
  %s2 = inlined_call_operand.vmem [shape: f32[8,128], index: 2, kind: input, shape index: {}]
  %s3 = inlined_call_operand.vmem [shape: f32[8,128], index: 3, kind: output, shape index: {}]
  %s4 = sld [smem:[#allocation0]]
  $region26: #{tk_model_forward.1} parent=0
    _
  %s6 = ssub.s32 1, %s4
  %s7 = scalar_select 0, %s6, %s4
  $region1: #{tk_model_forward.1} parent=0
    #allocation2 [shape = 'u8[163840]{0}', space=vmem, size = 0x28000, scoped, tag = 'input window, operand 1, single buffered']
    #allocation3 [shape = 's32[1]{0}', space=sflag, size = 0x4, scoped, tag = 'scoped memory for tk_model_forward.1']
    %8 = vsyncpa [#allocation3], 0
    // Predicated region
    $region2: #{tk_model_forward.1} parent=1 // pred_check
      _
    $region3: #{tk_model_forward.1} parent=1 // pred_check_branch
      %10 = sbr.rel (0) target = $region5
    $region4: #{tk_model_forward.1} parent=1 // pred_region
      _
    $region5: #{tk_model_forward.1} parent=1 // pred_fallthru
      _
    // Predicated region
    $region6: #{tk_model_forward.1} parent=1 // pred_check
      _
    $region7: #{tk_model_forward.1} parent=1 // pred_check_branch
      %12 = sbr.rel (0) target = $region9
    $region8: #{tk_model_forward.1} parent=1 // pred_region
      %s14 = ssub.s32 5120, 5120
      %15 = vsyncadd [#allocation3], %s14
      %s16 = sshll.u32 [#allocation2], 4
      %s17 = int_to_ptr.vmem [resolvable:$true] %s16
      %22 = dma.hbm_to_vmem [thread:$0]  %s1, 5120, %s17, [#allocation3], 64, 64, 4
    $region9: #{tk_model_forward.1} parent=1 // pred_fallthru
      _
    // Predicated region
    $region10: #{tk_model_forward.1} parent=1 // pred_check
      _
    $region11: #{tk_model_forward.1} parent=1 // pred_check_branch
      %24 = sbr.rel (0) target = $region13
    $region12: #{tk_model_forward.1} parent=1 // pred_region
      _
    $region13: #{tk_model_forward.1} parent=1 // pred_fallthru
      _
    // Predicated region
    $region14: #{tk_model_forward.1} parent=1 // pred_check
      _
    $region15: #{tk_model_forward.1} parent=1 // pred_check_branch
      %26 = sbr.rel (0) target = $region17
    $region16: #{tk_model_forward.1} parent=1 // pred_region
      %27 = dma.done [#allocation3], 5120
    $region17: #{tk_model_forward.1} parent=1 // pred_fallthru
      _
    %v29 = vld [vmem:[%s0] sm:$0xff]
    %v30 = vpack.c.bf16 %v29, %v29
    %v31 = vld [vmem:[#allocation2] sm:$0xf]
    %v32 = vld [vmem:[#allocation2 + $0x4] sm:$0xf]
    %v33 = vld [vmem:[#allocation2 + $0x8] sm:$0xf]
    %v34 = vld [vmem:[#allocation2 + $0xc] sm:$0xf]
    %v35 = vld [vmem:[#allocation2 + $0x10] sm:$0xf]
    %v36 = vld [vmem:[#allocation2 + $0x14] sm:$0xf]
    %v37 = vld [vmem:[#allocation2 + $0x18] sm:$0xf]
    %v38 = vld [vmem:[#allocation2 + $0x1c] sm:$0xf]
    %v39 = vld [vmem:[#allocation2 + $0x20] sm:$0xf]
    %v40 = vld [vmem:[#allocation2 + $0x24] sm:$0xf]
    %v41 = vld [vmem:[#allocation2 + $0x28] sm:$0xf]
    %v42 = vld [vmem:[#allocation2 + $0x2c] sm:$0xf]
    %v43 = vld [vmem:[#allocation2 + $0x30] sm:$0xf]
    %v44 = vld [vmem:[#allocation2 + $0x34] sm:$0xf]
    %v45 = vld [vmem:[#allocation2 + $0x38] sm:$0xf]
    %v46 = vld [vmem:[#allocation2 + $0x3c] sm:$0xf]
    %v47 = vld [vmem:[%s2] sm:$0x1]
    %v48 = vlaneseq
    %v49 = vshrl.u32 %v48, 7
    %v50 = vsub.s32 0, %v49
    %v51 = vrot.slane %v47, %v50
    %v68 = vunpack.c.l.b16 %v31
    %v69 = vunpack.c.l.b16 %v32
    %v70 = vunpack.c.l.b16 %v33
    %v71 = vunpack.c.l.b16 %v34
    %v72 = vunpack.c.l.b16 %v35
    %v73 = vunpack.c.l.b16 %v36
    %v74 = vunpack.c.l.b16 %v37
    %v75 = vunpack.c.l.b16 %v38
    %v76 = vunpack.c.l.b16 %v39
    %v77 = vunpack.c.l.b16 %v40
    %v78 = vunpack.c.l.b16 %v41
    %v79 = vunpack.c.l.b16 %v42
    %v80 = vunpack.c.l.b16 %v43
    %v81 = vunpack.c.l.b16 %v44
    %v82 = vunpack.c.l.b16 %v45
    %v83 = vunpack.c.l.b16 %v46
    %v84 = vpack.c.b16 %v69, %v68
    %v85 = vpack.c.b16 %v71, %v70
    %v86 = vpack.c.b16 %v73, %v72
    %v87 = vpack.c.b16 %v75, %v74
    %v88 = vpack.c.b16 %v77, %v76
    %v89 = vpack.c.b16 %v79, %v78
    %v90 = vpack.c.b16 %v81, %v80
    %v91 = vpack.c.b16 %v83, %v82
    %100 = vmatprep.subr.bf16.mxu0 0
    %101 = vmatpush1.bf16.msra.mxu0 %v84
    %102 = vmatprep.subr.bf16.mxu0 0
    %103 = vmatpush1.bf16.msra.mxu0 %v85
    %104 = vmatprep.subr.bf16.mxu0 0
    %105 = vmatpush1.bf16.msra.mxu0 %v86
    %106 = vmatprep.subr.bf16.mxu0 0
    %107 = vmatpush1.bf16.msra.mxu0 %v87
    %108 = vmatprep.subr.bf16.mxu0 0
    %109 = vmatpush1.bf16.msra.mxu0 %v88
    %110 = vmatprep.subr.bf16.mxu0 0
    %111 = vmatpush1.bf16.msra.mxu0 %v89
    %112 = vmatprep.subr.bf16.mxu0 0
    %113 = vmatpush1.bf16.msra.mxu0 %v90
    %114 = vmatprep.subr.bf16.mxu0 0
    %115 = vmatpush1.bf16.msra.mxu0 %v91
    %116 = vmatprep.subr.bf16.mxu0 0
    %117 = vmatpush1.bf16.msra.mxu0 0
    %118 = vmatprep.subr.bf16.mxu0 0
    %119 = vmatpush1.bf16.msra.mxu0 0
    %120 = vmatprep.subr.bf16.mxu0 0
    %121 = vmatpush1.bf16.msra.mxu0 0
    %122 = vmatprep.subr.bf16.mxu0 0
    %123 = vmatpush1.bf16.msra.mxu0 0
    %124 = vmatprep.subr.bf16.mxu0 0
    %125 = vmatpush1.bf16.msra.mxu0 0
    %126 = vmatprep.subr.bf16.mxu0 0
    %127 = vmatpush1.bf16.msra.mxu0 0
    %128 = vmatprep.subr.bf16.mxu0 0
    %129 = vmatpush1.bf16.msra.mxu0 0
    %130 = vmatprep.subr.bf16.mxu0 0
    %131 = vmatpush1.bf16.msra.mxu0 0
    %132 = vmatprep.mubr.bf16.mxu0 0
    %133 = vmatmul.mubr.bf16.gmra.mrb[0].mxu0 %v30
    %v134 = vpop.f32.mrb[0].mxu0
    %v135 = vadd.f32 %v51, %v134
    %v136 = vpop.f32.mrb[0].mxu0
    %v137 = vpop.f32.mrb[0].mxu0
    %v138 = vpop.f32.mrb[0].mxu0
    %139 = vdwg.mxu0
    %vm140 = vcmp.ge.f32.partialorder %v135, 0.0
    %v141 = vmul.f32 %v135, 0.1
    %v142 = vsel %vm140, %v135, %v141
    %v143 = vpack.c.bf16 %v142, %v142
    %s144 = scalar_lea.vmem [#allocation2], 64
    %v145 = vld [vmem:[%s144] sm:$0xf]
    %v146 = vld [vmem:[%s144 + $0x4] sm:$0xf]
    %v147 = vld [vmem:[%s144 + $0x8] sm:$0xf]
    %v148 = vld [vmem:[%s144 + $0xc] sm:$0xf]
    %v149 = vld [vmem:[%s144 + $0x10] sm:$0xf]
    %v150 = vld [vmem:[%s144 + $0x14] sm:$0xf]
    %v151 = vld [vmem:[%s144 + $0x18] sm:$0xf]
    %v152 = vld [vmem:[%s144 + $0x1c] sm:$0xf]
    %v153 = vld [vmem:[%s144 + $0x20] sm:$0xf]
    %v154 = vld [vmem:[%s144 + $0x24] sm:$0xf]
    %v155 = vld [vmem:[%s144 + $0x28] sm:$0xf]
    %v156 = vld [vmem:[%s144 + $0x2c] sm:$0xf]
    %v157 = vld [vmem:[%s144 + $0x30] sm:$0xf]
    %v158 = vld [vmem:[%s144 + $0x34] sm:$0xf]
    %v159 = vld [vmem:[%s144 + $0x38] sm:$0xf]
    %v160 = vld [vmem:[%s144 + $0x3c] sm:$0xf]
    %v161 = vld [vmem:[%s2 + $0x1] sm:$0x1]
    %v162 = vlaneseq
    %v163 = vshrl.u32 %v162, 7
    %v164 = vsub.s32 0, %v163
    %v165 = vrot.slane %v161, %v164
    %v182 = vunpack.c.l.b16 %v145
    %v183 = vunpack.c.l.b16 %v146
    %v184 = vunpack.c.l.b16 %v147
    %v185 = vunpack.c.l.b16 %v148
    %v186 = vunpack.c.l.b16 %v149
    %v187 = vunpack.c.l.b16 %v150
    %v188 = vunpack.c.l.b16 %v151
    %v189 = vunpack.c.l.b16 %v152
    %v190 = vunpack.c.l.b16 %v153
    %v191 = vunpack.c.l.b16 %v154
    %v192 = vunpack.c.l.b16 %v155
    %v193 = vunpack.c.l.b16 %v156
    %v194 = vunpack.c.l.b16 %v157
    %v195 = vunpack.c.l.b16 %v158
    %v196 = vunpack.c.l.b16 %v159
    %v197 = vunpack.c.l.b16 %v160
    %v198 = vpack.c.b16 %v183, %v182
    %v199 = vpack.c.b16 %v185, %v184
    %v200 = vpack.c.b16 %v187, %v186
    %v201 = vpack.c.b16 %v189, %v188
    %v202 = vpack.c.b16 %v191, %v190
    %v203 = vpack.c.b16 %v193, %v192
    %v204 = vpack.c.b16 %v195, %v194
    %v205 = vpack.c.b16 %v197, %v196
    %214 = vmatprep.subr.bf16.mxu0 0
    %215 = vmatpush1.bf16.msra.mxu0 %v198
    %216 = vmatprep.subr.bf16.mxu0 0
    %217 = vmatpush1.bf16.msra.mxu0 %v199
    %218 = vmatprep.subr.bf16.mxu0 0
    %219 = vmatpush1.bf16.msra.mxu0 %v200
    %220 = vmatprep.subr.bf16.mxu0 0
    %221 = vmatpush1.bf16.msra.mxu0 %v201
    %222 = vmatprep.subr.bf16.mxu0 0
    %223 = vmatpush1.bf16.msra.mxu0 %v202
    %224 = vmatprep.subr.bf16.mxu0 0
    %225 = vmatpush1.bf16.msra.mxu0 %v203
    %226 = vmatprep.subr.bf16.mxu0 0
    %227 = vmatpush1.bf16.msra.mxu0 %v204
    %228 = vmatprep.subr.bf16.mxu0 0
    %229 = vmatpush1.bf16.msra.mxu0 %v205
    %230 = vmatprep.subr.bf16.mxu0 0
    %231 = vmatpush1.bf16.msra.mxu0 0
    %232 = vmatprep.subr.bf16.mxu0 0
    %233 = vmatpush1.bf16.msra.mxu0 0
    %234 = vmatprep.subr.bf16.mxu0 0
    %235 = vmatpush1.bf16.msra.mxu0 0
    %236 = vmatprep.subr.bf16.mxu0 0
    %237 = vmatpush1.bf16.msra.mxu0 0
    %238 = vmatprep.subr.bf16.mxu0 0
    %239 = vmatpush1.bf16.msra.mxu0 0
    %240 = vmatprep.subr.bf16.mxu0 0
    %241 = vmatpush1.bf16.msra.mxu0 0
    %242 = vmatprep.subr.bf16.mxu0 0
    %243 = vmatpush1.bf16.msra.mxu0 0
    %244 = vmatprep.subr.bf16.mxu0 0
    %245 = vmatpush1.bf16.msra.mxu0 0
    %246 = vmatprep.mubr.bf16.mxu0 0
    %247 = vmatmul.mubr.bf16.gmra.mrb[0].mxu0 %v143
    %v248 = vpop.f32.mrb[0].mxu0
    %v249 = vadd.f32 %v165, %v248
    %v250 = vpop.f32.mrb[0].mxu0
    %v251 = vpop.f32.mrb[0].mxu0
    %v252 = vpop.f32.mrb[0].mxu0
    %253 = vdwg.mxu0
    %vm254 = vcmp.ge.f32.partialorder %v249, 0.0
    %v255 = vld [vmem:[%s2 + $0x2] sm:$0x1]
    %v256 = vlaneseq
    %v257 = vshrl.u32 %v256, 7
    %v258 = vsub.s32 0, %v257
    %v259 = vrot.slane %v255, %v258
    %v260 = vmul.f32 %v259, %v249
    %v261 = vsel %vm254, %v249, %v260
    %v262 = vpack.c.bf16 %v261, %v261
    %s263 = scalar_lea.vmem [#allocation2], 128
    %v264 = vld [vmem:[%s263] sm:$0xf]
    %v265 = vld [vmem:[%s263 + $0x4] sm:$0xf]
    %v266 = vld [vmem:[%s263 + $0x8] sm:$0xf]
    %v267 = vld [vmem:[%s263 + $0xc] sm:$0xf]
    %v268 = vld [vmem:[%s263 + $0x10] sm:$0xf]
    %v269 = vld [vmem:[%s263 + $0x14] sm:$0xf]
    %v270 = vld [vmem:[%s263 + $0x18] sm:$0xf]
    %v271 = vld [vmem:[%s263 + $0x1c] sm:$0xf]
    %v272 = vld [vmem:[%s263 + $0x20] sm:$0xf]
    %v273 = vld [vmem:[%s263 + $0x24] sm:$0xf]
    %v274 = vld [vmem:[%s263 + $0x28] sm:$0xf]
    %v275 = vld [vmem:[%s263 + $0x2c] sm:$0xf]
    %v276 = vld [vmem:[%s263 + $0x30] sm:$0xf]
    %v277 = vld [vmem:[%s263 + $0x34] sm:$0xf]
    %v278 = vld [vmem:[%s263 + $0x38] sm:$0xf]
    %v279 = vld [vmem:[%s263 + $0x3c] sm:$0xf]
    %v280 = vld [vmem:[%s2 + $0x3] sm:$0x1]
    %v281 = vlaneseq
    %v282 = vshrl.u32 %v281, 7
    %v283 = vsub.s32 0, %v282
    %v284 = vrot.slane %v280, %v283
    %v301 = vunpack.c.l.b16 %v264
    %v302 = vunpack.c.l.b16 %v265
    %v303 = vunpack.c.l.b16 %v266
    %v304 = vunpack.c.l.b16 %v267
    %v305 = vunpack.c.l.b16 %v268
    %v306 = vunpack.c.l.b16 %v269
    %v307 = vunpack.c.l.b16 %v270
    %v308 = vunpack.c.l.b16 %v271
    %v309 = vunpack.c.l.b16 %v272
    %v310 = vunpack.c.l.b16 %v273
    %v311 = vunpack.c.l.b16 %v274
    %v312 = vunpack.c.l.b16 %v275
    %v313 = vunpack.c.l.b16 %v276
    %v314 = vunpack.c.l.b16 %v277
    %v315 = vunpack.c.l.b16 %v278
    %v316 = vunpack.c.l.b16 %v279
    %v317 = vpack.c.b16 %v302, %v301
    %v318 = vpack.c.b16 %v304, %v303
    %v319 = vpack.c.b16 %v306, %v305
    %v320 = vpack.c.b16 %v308, %v307
    %v321 = vpack.c.b16 %v310, %v309
    %v322 = vpack.c.b16 %v312, %v311
    %v323 = vpack.c.b16 %v314, %v313
    %v324 = vpack.c.b16 %v316, %v315
    %333 = vmatprep.subr.bf16.mxu0 0
    %334 = vmatpush1.bf16.msra.mxu0 %v317
    %335 = vmatprep.subr.bf16.mxu0 0
    %336 = vmatpush1.bf16.msra.mxu0 %v318
    %337 = vmatprep.subr.bf16.mxu0 0
    %338 = vmatpush1.bf16.msra.mxu0 %v319
    %339 = vmatprep.subr.bf16.mxu0 0
    %340 = vmatpush1.bf16.msra.mxu0 %v320
    %341 = vmatprep.subr.bf16.mxu0 0
    %342 = vmatpush1.bf16.msra.mxu0 %v321
    %343 = vmatprep.subr.bf16.mxu0 0
    %344 = vmatpush1.bf16.msra.mxu0 %v322
    %345 = vmatprep.subr.bf16.mxu0 0
    %346 = vmatpush1.bf16.msra.mxu0 %v323
    %347 = vmatprep.subr.bf16.mxu0 0
    %348 = vmatpush1.bf16.msra.mxu0 %v324
    %349 = vmatprep.subr.bf16.mxu0 0
    %350 = vmatpush1.bf16.msra.mxu0 0
    %351 = vmatprep.subr.bf16.mxu0 0
    %352 = vmatpush1.bf16.msra.mxu0 0
    %353 = vmatprep.subr.bf16.mxu0 0
    %354 = vmatpush1.bf16.msra.mxu0 0
    %355 = vmatprep.subr.bf16.mxu0 0
    %356 = vmatpush1.bf16.msra.mxu0 0
    %357 = vmatprep.subr.bf16.mxu0 0
    %358 = vmatpush1.bf16.msra.mxu0 0
    %359 = vmatprep.subr.bf16.mxu0 0
    %360 = vmatpush1.bf16.msra.mxu0 0
    %361 = vmatprep.subr.bf16.mxu0 0
    %362 = vmatpush1.bf16.msra.mxu0 0
    %363 = vmatprep.subr.bf16.mxu0 0
    %364 = vmatpush1.bf16.msra.mxu0 0
    %365 = vmatprep.mubr.bf16.mxu0 0
    %366 = vmatmul.mubr.bf16.gmra.mrb[0].mxu0 %v262
    %v367 = vpop.f32.mrb[0].mxu0
    %v368 = vadd.f32 %v284, %v367
    %v369 = vpop.f32.mrb[0].mxu0
    %v370 = vpop.f32.mrb[0].mxu0
    %v371 = vpop.f32.mrb[0].mxu0
    %372 = vdwg.mxu0
    %vm373 = vcmp.ge.f32.partialorder %v368, 0.0
    %v374 = vmul.f32 %v368, 0.1
    %v375 = vsel %vm373, %v368, %v374
    %v376 = vpack.c.bf16 %v375, %v375
    %s377 = scalar_lea.vmem [#allocation2], 192
    %v378 = vld [vmem:[%s377] sm:$0xf]
    %v379 = vld [vmem:[%s377 + $0x4] sm:$0xf]
    %v380 = vld [vmem:[%s377 + $0x8] sm:$0xf]
    %v381 = vld [vmem:[%s377 + $0xc] sm:$0xf]
    %v382 = vld [vmem:[%s377 + $0x10] sm:$0xf]
    %v383 = vld [vmem:[%s377 + $0x14] sm:$0xf]
    %v384 = vld [vmem:[%s377 + $0x18] sm:$0xf]
    %v385 = vld [vmem:[%s377 + $0x1c] sm:$0xf]
    %v386 = vld [vmem:[%s377 + $0x20] sm:$0xf]
    %v387 = vld [vmem:[%s377 + $0x24] sm:$0xf]
    %v388 = vld [vmem:[%s377 + $0x28] sm:$0xf]
    %v389 = vld [vmem:[%s377 + $0x2c] sm:$0xf]
    %v390 = vld [vmem:[%s377 + $0x30] sm:$0xf]
    %v391 = vld [vmem:[%s377 + $0x34] sm:$0xf]
    %v392 = vld [vmem:[%s377 + $0x38] sm:$0xf]
    %v393 = vld [vmem:[%s377 + $0x3c] sm:$0xf]
    %v394 = vld [vmem:[%s2 + $0x4] sm:$0x1]
    %v395 = vlaneseq
    %v396 = vshrl.u32 %v395, 7
    %v397 = vsub.s32 0, %v396
    %v398 = vrot.slane %v394, %v397
    %v415 = vunpack.c.l.b16 %v378
    %v416 = vunpack.c.l.b16 %v379
    %v417 = vunpack.c.l.b16 %v380
    %v418 = vunpack.c.l.b16 %v381
    %v419 = vunpack.c.l.b16 %v382
    %v420 = vunpack.c.l.b16 %v383
    %v421 = vunpack.c.l.b16 %v384
    %v422 = vunpack.c.l.b16 %v385
    %v423 = vunpack.c.l.b16 %v386
    %v424 = vunpack.c.l.b16 %v387
    %v425 = vunpack.c.l.b16 %v388
    %v426 = vunpack.c.l.b16 %v389
    %v427 = vunpack.c.l.b16 %v390
    %v428 = vunpack.c.l.b16 %v391
    %v429 = vunpack.c.l.b16 %v392
    %v430 = vunpack.c.l.b16 %v393
    %v431 = vpack.c.b16 %v416, %v415
    %v432 = vpack.c.b16 %v418, %v417
    %v433 = vpack.c.b16 %v420, %v419
    %v434 = vpack.c.b16 %v422, %v421
    %v435 = vpack.c.b16 %v424, %v423
    %v436 = vpack.c.b16 %v426, %v425
    %v437 = vpack.c.b16 %v428, %v427
    %v438 = vpack.c.b16 %v430, %v429
    %447 = vmatprep.subr.bf16.mxu0 0
    %448 = vmatpush1.bf16.msra.mxu0 %v431
    %449 = vmatprep.subr.bf16.mxu0 0
    %450 = vmatpush1.bf16.msra.mxu0 %v432
    %451 = vmatprep.subr.bf16.mxu0 0
    %452 = vmatpush1.bf16.msra.mxu0 %v433
    %453 = vmatprep.subr.bf16.mxu0 0
    %454 = vmatpush1.bf16.msra.mxu0 %v434
    %455 = vmatprep.subr.bf16.mxu0 0
    %456 = vmatpush1.bf16.msra.mxu0 %v435
    %457 = vmatprep.subr.bf16.mxu0 0
    %458 = vmatpush1.bf16.msra.mxu0 %v436
    %459 = vmatprep.subr.bf16.mxu0 0
    %460 = vmatpush1.bf16.msra.mxu0 %v437
    %461 = vmatprep.subr.bf16.mxu0 0
    %462 = vmatpush1.bf16.msra.mxu0 %v438
    %463 = vmatprep.subr.bf16.mxu0 0
    %464 = vmatpush1.bf16.msra.mxu0 0
    %465 = vmatprep.subr.bf16.mxu0 0
    %466 = vmatpush1.bf16.msra.mxu0 0
    %467 = vmatprep.subr.bf16.mxu0 0
    %468 = vmatpush1.bf16.msra.mxu0 0
    %469 = vmatprep.subr.bf16.mxu0 0
    %470 = vmatpush1.bf16.msra.mxu0 0
    %471 = vmatprep.subr.bf16.mxu0 0
    %472 = vmatpush1.bf16.msra.mxu0 0
    %473 = vmatprep.subr.bf16.mxu0 0
    %474 = vmatpush1.bf16.msra.mxu0 0
    %475 = vmatprep.subr.bf16.mxu0 0
    %476 = vmatpush1.bf16.msra.mxu0 0
    %477 = vmatprep.subr.bf16.mxu0 0
    %478 = vmatpush1.bf16.msra.mxu0 0
    %479 = vmatprep.mubr.bf16.mxu0 0
    %480 = vmatmul.mubr.bf16.gmra.mrb[0].mxu0 %v376
    %v481 = vpop.f32.mrb[0].mxu0
    %v482 = vadd.f32 %v398, %v481
    %v483 = vpop.f32.mrb[0].mxu0
    %v484 = vpop.f32.mrb[0].mxu0
    %v485 = vpop.f32.mrb[0].mxu0
    %486 = vdwg.mxu0
    %v487 = vmul.f32 %v482, 0.5
    %v488 = vtanh.pop %v487
    %v489 = vadd.f32 %v488, 1.0
    %v490 = vmul.f32 %v489, 0.5
    %v491 = vpack.c.bf16 %v490, %v490
    %s492 = scalar_lea.vmem [#allocation2], 256
    %v493 = vld [vmem:[%s492] sm:$0xf]
    %v494 = vld [vmem:[%s492 + $0x4] sm:$0xf]
    %v495 = vld [vmem:[%s492 + $0x8] sm:$0xf]
    %v496 = vld [vmem:[%s492 + $0xc] sm:$0xf]
    %v497 = vld [vmem:[%s492 + $0x10] sm:$0xf]
    %v498 = vld [vmem:[%s492 + $0x14] sm:$0xf]
    %v499 = vld [vmem:[%s492 + $0x18] sm:$0xf]
    %v500 = vld [vmem:[%s492 + $0x1c] sm:$0xf]
    %v501 = vld [vmem:[%s492 + $0x20] sm:$0xf]
    %v502 = vld [vmem:[%s492 + $0x24] sm:$0xf]
    %v503 = vld [vmem:[%s492 + $0x28] sm:$0xf]
    %v504 = vld [vmem:[%s492 + $0x2c] sm:$0xf]
    %v505 = vld [vmem:[%s492 + $0x30] sm:$0xf]
    %v506 = vld [vmem:[%s492 + $0x34] sm:$0xf]
    %v507 = vld [vmem:[%s492 + $0x38] sm:$0xf]
    %v508 = vld [vmem:[%s492 + $0x3c] sm:$0xf]
    %v509 = vld [vmem:[%s2 + $0x5] sm:$0x1]
    %v510 = vlaneseq
    %v511 = vshrl.u32 %v510, 7
    %v512 = vsub.s32 0, %v511
    %v513 = vrot.slane %v509, %v512
    %v530 = vunpack.c.l.b16 %v493
    %v531 = vunpack.c.l.b16 %v494
    %v532 = vunpack.c.l.b16 %v495
    %v533 = vunpack.c.l.b16 %v496
    %v534 = vunpack.c.l.b16 %v497
    %v535 = vunpack.c.l.b16 %v498
    %v536 = vunpack.c.l.b16 %v499
    %v537 = vunpack.c.l.b16 %v500
    %v538 = vunpack.c.l.b16 %v501
    %v539 = vunpack.c.l.b16 %v502
    %v540 = vunpack.c.l.b16 %v503
    %v541 = vunpack.c.l.b16 %v504
    %v542 = vunpack.c.l.b16 %v505
    %v543 = vunpack.c.l.b16 %v506
    %v544 = vunpack.c.l.b16 %v507
    %v545 = vunpack.c.l.b16 %v508
    %v546 = vpack.c.b16 %v531, %v530
    %v547 = vpack.c.b16 %v533, %v532
    %v548 = vpack.c.b16 %v535, %v534
    %v549 = vpack.c.b16 %v537, %v536
    %v550 = vpack.c.b16 %v539, %v538
    %v551 = vpack.c.b16 %v541, %v540
    %v552 = vpack.c.b16 %v543, %v542
    %v553 = vpack.c.b16 %v545, %v544
    %562 = vmatprep.subr.bf16.mxu0 0
    %563 = vmatpush1.bf16.msra.mxu0 %v546
    %564 = vmatprep.subr.bf16.mxu0 0
    %565 = vmatpush1.bf16.msra.mxu0 %v547
    %566 = vmatprep.subr.bf16.mxu0 0
    %567 = vmatpush1.bf16.msra.mxu0 %v548
    %568 = vmatprep.subr.bf16.mxu0 0
    %569 = vmatpush1.bf16.msra.mxu0 %v549
    %570 = vmatprep.subr.bf16.mxu0 0
    %571 = vmatpush1.bf16.msra.mxu0 %v550
    %572 = vmatprep.subr.bf16.mxu0 0
    %573 = vmatpush1.bf16.msra.mxu0 %v551
    %574 = vmatprep.subr.bf16.mxu0 0
    %575 = vmatpush1.bf16.msra.mxu0 %v552
    %576 = vmatprep.subr.bf16.mxu0 0
    %577 = vmatpush1.bf16.msra.mxu0 %v553
    %578 = vmatprep.subr.bf16.mxu0 0
    %579 = vmatpush1.bf16.msra.mxu0 0
    %580 = vmatprep.subr.bf16.mxu0 0
    %581 = vmatpush1.bf16.msra.mxu0 0
    %582 = vmatprep.subr.bf16.mxu0 0
    %583 = vmatpush1.bf16.msra.mxu0 0
    %584 = vmatprep.subr.bf16.mxu0 0
    %585 = vmatpush1.bf16.msra.mxu0 0
    %586 = vmatprep.subr.bf16.mxu0 0
    %587 = vmatpush1.bf16.msra.mxu0 0
    %588 = vmatprep.subr.bf16.mxu0 0
    %589 = vmatpush1.bf16.msra.mxu0 0
    %590 = vmatprep.subr.bf16.mxu0 0
    %591 = vmatpush1.bf16.msra.mxu0 0
    %592 = vmatprep.subr.bf16.mxu0 0
    %593 = vmatpush1.bf16.msra.mxu0 0
    %594 = vmatprep.mubr.bf16.mxu0 0
    %595 = vmatmul.mubr.bf16.gmra.mrb[0].mxu0 %v491
    %v596 = vpop.f32.mrb[0].mxu0
    %v597 = vadd.f32 %v513, %v596
    %v598 = vpop.f32.mrb[0].mxu0
    %v599 = vpop.f32.mrb[0].mxu0
    %v600 = vpop.f32.mrb[0].mxu0
    %601 = vdwg.mxu0
    %602 = vmax.xlane.f32.xlu0 %v597
    %v603 = vpop.xlane.xlu0 %602
    %v604 = vsub.f32 %v597, %v603
    %v605 = vmul.f32 %v604, 1.442695
    %v606 = vpow.pop %v605
    %607 = vadd.xlane.f32.xlu0 %v606
    %v608 = vpop.xlane.xlu0 %607
    %v609 = vrcp.pop %v608
    %v610 = vmul.f32 %v606, %v609
    %611 = vst [vmem:[%s3] sm:$0xff] %v610
    // Predicated region
    $region18: #{tk_model_forward.1} parent=1 // pred_check
      _
    $region19: #{tk_model_forward.1} parent=1 // pred_check_branch
      %613 = sbr.rel (0) target = $region21
    $region20: #{tk_model_forward.1} parent=1 // pred_region
      _
    $region21: #{tk_model_forward.1} parent=1 // pred_fallthru
      _
    // Predicated region
    $region22: #{tk_model_forward.1} parent=1 // pred_check
      _
    $region23: #{tk_model_forward.1} parent=1 // pred_check_branch
      %615 = sbr.rel (0) target = $region25
    $region24: #{tk_model_forward.1} parent=1 // pred_region
      _
    $region25: #{tk_model_forward.1} parent=1 // pred_fallthru
      _
    %616 = vsyncpa [#allocation3], 1

</llo_original>
